<compile_context>
chip_gen: v7x
topology: tpu7x:2x2x1
jax: 0.10.0
libtpu: 0.0.40
codegen_flags: <defaults>
</compile_context>

<pallas_src>
import functools

import jax
import jax.numpy as jnp
from jax.experimental import pallas as pl
from jax.experimental.pallas import tpu as pltpu


def cfg_denoiser_kernel(scale_ref,       # SMEM [1]              f32 (cond_scale)
                        x_ref,           # VMEM [1, C, TILE_N]   f32
                        pu_ref,          # VMEM [1, Hd, 1]       f32  uncond@wc + b1
                        pc_ref,          # VMEM [1, Hd, 1]       f32  cond@wc + b1
                        w1s_ref,         # VMEM [1, Hd, C]       mxu_dtype  (c_in[b] * w1^T)
                        w2t_ref,         # VMEM [C, Hd]          mxu_dtype
                        b2_ref,          # VMEM [C, 1]           f32
                        o_ref,           # VMEM [1, C, TILE_N]   f32
                        *, mxu_dtype, ew_dtype):
    cond_scale = scale_ref[0]

    # Input scaling is already folded into the per-batch first-layer weight,
    # so the pixels go straight to the MXU operand dtype.
    xs = x_ref[0].astype(mxu_dtype)                                 # [C, TILE_N]

    # Shared first-layer matmul (computed once for both CFG halves).
    hx = jnp.dot(w1s_ref[0], xs,
                 preferred_element_type=jnp.float32)                # [Hd, TILE_N] f32
    hx_e = hx.astype(ew_dtype)

    # Per-half hidden activations (conditioning projections + b1 precomputed).
    # Elementwise bias add + gelu in ew_dtype (bf16 on v6e/v7x, f32 on v5e).
    h_u = jax.nn.gelu(hx_e + pu_ref[0].astype(ew_dtype), approximate=True)
    h_c = jax.nn.gelu(hx_e + pc_ref[0].astype(ew_dtype), approximate=True)

    # Output projections for both halves: the extra matmul rides on the
    # otherwise-idle MXU.  Combine in OUTPUT space, in f32, matching the
    # reference `uncond + (cond - uncond) * cond_scale` ordering exactly
    # (b2 cancels inside the difference, so it is added once at the end).
    y_u = jnp.dot(w2t_ref[...], h_u.astype(mxu_dtype),
                  preferred_element_type=jnp.float32)               # [C, TILE_N] f32
    y_c = jnp.dot(w2t_ref[...], h_c.astype(mxu_dtype),
                  preferred_element_type=jnp.float32)               # [C, TILE_N] f32

    o_ref[0] = y_u + (y_c - y_u) * cond_scale + b2_ref[...]


def cfg_denoiser(x, sigma, uncond, cond, cond_scale, params, *,
                 mxu_dtype=jnp.float32, ew_dtype=jnp.float32, tile_n=None):
    """x: [B, C, H, W] (NCHW, as in PyTorch); sigma: [B]; uncond/cond: [B, D];
    cond_scale: scalar (runtime SMEM value, no recompile per guidance value).

    mxu_dtype: MXU operand dtype (bf16 is fine on every generation; f32 accum).
    ew_dtype:  elementwise (bias/gelu) dtype; use bf16 on v6e/v7x, f32 on v5e.
    """
    B, C, H, W = x.shape
    N = H * W
    Hd = params["w1"].shape[-1]

    # Pure reshape -- no HBM transpose (kernel layout is [B, C, H*W]).
    x_pix = x.reshape(B, C, N).astype(jnp.float32)

    # Karras input scaling folded into per-batch first-layer weights: tiny
    # [B, Hd, C] tensor, removes the per-tile rsqrt + [C,TILE_N] multiply.
    c_in = jax.lax.rsqrt(sigma.astype(jnp.float32) ** 2 + 1.0)          # [B]
    w1t = params["w1"].T.astype(jnp.float32)                            # [Hd, C]
    w1s = (c_in[:, None, None] * w1t[None]).astype(mxu_dtype)           # [B, Hd, C]

    # Hoisted tiny conditioning projections, first-layer bias folded in: [B, Hd, 1]
    wc = params["wc"].astype(jnp.float32)
    b1 = params["b1"].astype(jnp.float32)
    proj_u = (uncond.astype(jnp.float32) @ wc + b1)[:, :, None]
    proj_c = (cond.astype(jnp.float32) @ wc + b1)[:, :, None]

    w2t = params["w2"].T.astype(mxu_dtype)                               # [C, Hd]
    b2 = params["b2"].astype(jnp.float32).reshape(C, 1)                  # [C, 1]

    # Pixel-tile size: multiple of 128 lanes, big enough to amortize the
    # per-grid-step overhead.  Live VMEM at tile_n=4096 is only a few MiB
    # (f32) so this fits every generation (incl. v7x's 64 MiB / 32 MiB scoped).
    if tile_n is None:
        tile_n = N if N <= 4096 else 4096
        # With a single batch item, split the pixels so both v7x TensorCores
        # (sharded over the "parallel" grid axes) get work.
        if B == 1 and tile_n == N and N >= 256 and (N // 2) % 128 == 0:
            tile_n = N // 2
    assert N % tile_n == 0 and (tile_n % 128 == 0 or tile_n == N), \
        "tile_n must divide N and be lane-aligned (multiple of 128) or equal N"
    n_tiles = N // tile_n

    kernel = functools.partial(cfg_denoiser_kernel,
                               mxu_dtype=mxu_dtype, ew_dtype=ew_dtype)

    out = pl.pallas_call(
        kernel,
        out_shape=jax.ShapeDtypeStruct((B, C, N), jnp.float32),
        # B outer / pixel-tile inner: weights stay resident, proj_u/proj_c are
        # re-fetched only B times.
        grid=(B, n_tiles),
        in_specs=[
            pl.BlockSpec(memory_space=pltpu.MemorySpace.SMEM),        # cond_scale [1]
            pl.BlockSpec((1, C, tile_n), lambda b, n: (b, 0, n)),     # x pixels
            pl.BlockSpec((1, Hd, 1), lambda b, n: (b, 0, 0)),         # uncond proj
            pl.BlockSpec((1, Hd, 1), lambda b, n: (b, 0, 0)),         # cond proj
            pl.BlockSpec((1, Hd, C), lambda b, n: (b, 0, 0)),         # c_in[b]*w1^T
            pl.BlockSpec((C, Hd), lambda b, n: (0, 0)),               # w2^T
            pl.BlockSpec((C, 1), lambda b, n: (0, 0)),                # b2
        ],
        out_specs=pl.BlockSpec((1, C, tile_n), lambda b, n: (b, 0, n)),
        compiler_params=pltpu.CompilerParams(
            dimension_semantics=("parallel", "parallel"),
            vmem_limit_bytes=32 * 1024 * 1024,
        ),
    )(jnp.asarray([cond_scale], jnp.float32),
      x_pix, proj_u, proj_c, w1s, w2t, b2)

    return out.reshape(B, C, H, W)   # pure reshape back to NCHW


def _reference(x, sigma, uncond, cond, cond_scale, params):
    """Pure-JAX f32 reference mirroring PyTorch CFGDenoiser.forward exactly
    (concat both halves, run inner model, chunk, combine in output space)."""
    def inner_model(x_in, sigma_in, cond_in):
        B, C, H, W = x_in.shape
        c_in = jax.lax.rsqrt(sigma_in * sigma_in + 1.0)              # [2B]
        xs = x_in.reshape(B, C, H * W) * c_in[:, None, None]         # [2B, C, N]
        h = (jnp.einsum("ch,bcn->bhn", params["w1"], xs)
             + (cond_in @ params["wc"] + params["b1"])[:, :, None])
        h = jax.nn.gelu(h, approximate=True)
        y = jnp.einsum("hc,bhn->bcn", params["w2"], h) + params["b2"][:, None]
        return y.reshape(B, C, H, W)

    x_in = jnp.concatenate([x] * 2)
    sigma_in = jnp.concatenate([sigma] * 2)
    cond_in = jnp.concatenate([uncond, cond])
    out = inner_model(x_in, sigma_in, cond_in)
    un, co = jnp.split(out, 2, axis=0)
    return un + (co - un) * cond_scale


if __name__ == "__main__":
    B, C, H, W = 2, 4, 16, 16      # SD-latent-like small shapes
    D, Hd = 32, 64                 # conditioning / hidden dim of synthetic inner model
    cond_scale = 7.5

    key = jax.random.PRNGKey(0)
    k = jax.random.split(key, 8)
    x = jax.random.normal(k[0], (B, C, H, W), jnp.float32)
    sigma = jax.random.uniform(k[1], (B,), jnp.float32, 0.1, 5.0)
    uncond = jax.random.normal(k[2], (B, D), jnp.float32)
    cond = jax.random.normal(k[3], (B, D), jnp.float32)

    params = {
        "w1": jax.random.normal(k[4], (C, Hd), jnp.float32) * 0.2,
        "wc": jax.random.normal(k[5], (D, Hd), jnp.float32) * 0.2,
        "w2": jax.random.normal(k[6], (Hd, C), jnp.float32) * 0.2,
        "b1": jax.random.normal(k[7], (Hd,), jnp.float32) * 0.05,
        "b2": jnp.zeros((C,), jnp.float32),
    }

    ref = _reference(x, sigma, uncond, cond, cond_scale, params)

    # 1) f32 path: exact up to the c_in-fold FP reassociation (tiny).
    out = jax.block_until_ready(
        cfg_denoiser(x, sigma, uncond, cond, cond_scale, params,
                     mxu_dtype=jnp.float32, ew_dtype=jnp.float32))
    assert out.shape == (B, C, H, W)
    err = jnp.max(jnp.abs(out - ref))
    assert jnp.allclose(out, ref, atol=5e-4, rtol=1e-4), f"f32 max abs err={err}"

    # 2) bf16-operand MXU fast path (works on all generations); enable bf16
    #    elementwise only on v6e/v7x (v5e and older have no bf16 VPU/EUP).
    kind = jax.devices()[0].device_kind.lower()
    ew = jnp.float32 if any(s in kind for s in ("v2", "v3", "v4", "v5")) else jnp.bfloat16
    out_bf16 = jax.block_until_ready(
        cfg_denoiser(x, sigma, uncond, cond, cond_scale, params,
                     mxu_dtype=jnp.bfloat16, ew_dtype=ew))
    rel = jnp.max(jnp.abs(out_bf16 - ref)) / (jnp.max(jnp.abs(ref)) + 1e-6)
    assert bool(jnp.isfinite(out_bf16).all()) and float(rel) < 3e-2, \
        f"bf16 normalized err={rel}"

    print("KERNEL_OK")
</pallas_src>

<mosaic_0001>
module attributes {stable_mosaic.version = 11 : i64} {
  func.func @cfg_denoiser_kernel(%arg0: i32, %arg1: i32, %arg2: memref<1xf32, #tpu.memory_space<smem>>, %arg3: memref<1x4x256xf32, #tpu.memory_space<vmem>>, %arg4: memref<1x64x1xf32, #tpu.memory_space<vmem>>, %arg5: memref<1x64x1xf32, #tpu.memory_space<vmem>>, %arg6: memref<1x64x4xf32, #tpu.memory_space<vmem>>, %arg7: memref<4x64xf32, #tpu.memory_space<vmem>>, %arg8: memref<4x1xf32, #tpu.memory_space<vmem>>, %arg9: memref<1x4x256xf32, #tpu.memory_space<vmem>>) attributes {dimension_semantics = [#tpu.dimension_semantics<parallel>, #tpu.dimension_semantics<parallel>], iteration_bounds = array<i64: 2, 1>, scalar_prefetch = 0 : i64, scratch_operands = 0 : i64, tpu.core_type = #tpu.core_type<tc>, window_params = [{transform_indices = @transform_0, window_bounds = array<i64: 1>}, {transform_indices = @transform_1, window_bounds = array<i64: 1, 4, 256>}, {transform_indices = @transform_2, window_bounds = array<i64: 1, 64, 1>}, {transform_indices = @transform_3, window_bounds = array<i64: 1, 64, 1>}, {transform_indices = @transform_4, window_bounds = array<i64: 1, 64, 4>}, {pipeline_mode = #tpu.pipeline_mode<synchronous>, transform_indices = @transform_5, window_bounds = array<i64: 4, 64>}, {pipeline_mode = #tpu.pipeline_mode<synchronous>, transform_indices = @transform_6, window_bounds = array<i64: 4, 1>}, {transform_indices = @transform_7, window_bounds = array<i64: 1, 4, 256>}]} {
    %c0 = arith.constant 0 : index
    %0 = memref.load %arg2[%c0] : memref<1xf32, #tpu.memory_space<smem>>
    %c0_0 = arith.constant 0 : index
    %c0_1 = arith.constant 0 : index
    %c0_2 = arith.constant 0 : index
    %1 = vector.load %arg3[%c0_0, %c0_1, %c0_2] : memref<1x4x256xf32, #tpu.memory_space<vmem>>, vector<1x4x256xf32>
    %2 = vector.shape_cast %1 : vector<1x4x256xf32> to vector<4x256xf32>
    %c0_3 = arith.constant 0 : index
    %c0_4 = arith.constant 0 : index
    %c0_5 = arith.constant 0 : index
    %3 = vector.load %arg6[%c0_3, %c0_4, %c0_5] : memref<1x64x4xf32, #tpu.memory_space<vmem>>, vector<1x64x4xf32>
    %4 = vector.shape_cast %3 : vector<1x64x4xf32> to vector<64x4xf32>
    %cst = arith.constant dense<0.000000e+00> : vector<64x256xf32>
    %5 = tpu.matmul %4, %2, %cst {dimension_numbers = #tpu.dot_dimension_numbers<[1], [0], [0], [1], [0, 0, 1, 1], [], []>} : vector<64x4xf32>, vector<4x256xf32>, vector<64x256xf32> -> vector<64x256xf32>
    %c0_6 = arith.constant 0 : index
    %c0_7 = arith.constant 0 : index
    %c0_8 = arith.constant 0 : index
    %6 = vector.load %arg4[%c0_6, %c0_7, %c0_8] : memref<1x64x1xf32, #tpu.memory_space<vmem>>, vector<1x64x1xf32>
    %7 = vector.shape_cast %6 : vector<1x64x1xf32> to vector<64x1xf32>
    %8 = vector.broadcast %7 : vector<64x1xf32> to vector<64x256xf32>
    %9 = arith.addf %5, %8 : vector<64x256xf32>
    %10 = arith.mulf %9, %9 : vector<64x256xf32>
    %11 = arith.mulf %9, %10 : vector<64x256xf32>
    %cst_9 = arith.constant 4.471500e-02 : f32
    %12 = vector.broadcast %cst_9 : f32 to vector<64x256xf32>
    %13 = arith.mulf %12, %11 : vector<64x256xf32>
    %14 = arith.addf %9, %13 : vector<64x256xf32>
    %cst_10 = arith.constant 0.797884583 : f32
    %15 = vector.broadcast %cst_10 : f32 to vector<64x256xf32>
    %16 = arith.mulf %15, %14 : vector<64x256xf32>
    %17 = math.tanh %16 : vector<64x256xf32>
    %cst_11 = arith.constant 1.000000e+00 : f32
    %18 = vector.broadcast %cst_11 : f32 to vector<64x256xf32>
    %19 = arith.addf %18, %17 : vector<64x256xf32>
    %cst_12 = arith.constant 5.000000e-01 : f32
    %20 = vector.broadcast %cst_12 : f32 to vector<64x256xf32>
    %21 = arith.mulf %20, %19 : vector<64x256xf32>
    %22 = arith.mulf %9, %21 : vector<64x256xf32>
    %c0_13 = arith.constant 0 : index
    %c0_14 = arith.constant 0 : index
    %c0_15 = arith.constant 0 : index
    %23 = vector.load %arg5[%c0_13, %c0_14, %c0_15] : memref<1x64x1xf32, #tpu.memory_space<vmem>>, vector<1x64x1xf32>
    %24 = vector.shape_cast %23 : vector<1x64x1xf32> to vector<64x1xf32>
    %25 = vector.broadcast %24 : vector<64x1xf32> to vector<64x256xf32>
    %26 = arith.addf %5, %25 : vector<64x256xf32>
    %27 = arith.mulf %26, %26 : vector<64x256xf32>
    %28 = arith.mulf %26, %27 : vector<64x256xf32>
    %cst_16 = arith.constant 4.471500e-02 : f32
    %29 = vector.broadcast %cst_16 : f32 to vector<64x256xf32>
    %30 = arith.mulf %29, %28 : vector<64x256xf32>
    %31 = arith.addf %26, %30 : vector<64x256xf32>
    %cst_17 = arith.constant 0.797884583 : f32
    %32 = vector.broadcast %cst_17 : f32 to vector<64x256xf32>
    %33 = arith.mulf %32, %31 : vector<64x256xf32>
    %34 = math.tanh %33 : vector<64x256xf32>
    %cst_18 = arith.constant 1.000000e+00 : f32
    %35 = vector.broadcast %cst_18 : f32 to vector<64x256xf32>
    %36 = arith.addf %35, %34 : vector<64x256xf32>
    %cst_19 = arith.constant 5.000000e-01 : f32
    %37 = vector.broadcast %cst_19 : f32 to vector<64x256xf32>
    %38 = arith.mulf %37, %36 : vector<64x256xf32>
    %39 = arith.mulf %26, %38 : vector<64x256xf32>
    %c0_20 = arith.constant 0 : index
    %c0_21 = arith.constant 0 : index
    %40 = vector.load %arg7[%c0_20, %c0_21] : memref<4x64xf32, #tpu.memory_space<vmem>>, vector<4x64xf32>
    %cst_22 = arith.constant dense<0.000000e+00> : vector<4x256xf32>
    %41 = tpu.matmul %40, %22, %cst_22 {dimension_numbers = #tpu.dot_dimension_numbers<[1], [0], [0], [1], [0, 0, 1, 1], [], []>} : vector<4x64xf32>, vector<64x256xf32>, vector<4x256xf32> -> vector<4x256xf32>
    %c0_23 = arith.constant 0 : index
    %c0_24 = arith.constant 0 : index
    %42 = vector.load %arg7[%c0_23, %c0_24] : memref<4x64xf32, #tpu.memory_space<vmem>>, vector<4x64xf32>
    %cst_25 = arith.constant dense<0.000000e+00> : vector<4x256xf32>
    %43 = tpu.matmul %42, %39, %cst_25 {dimension_numbers = #tpu.dot_dimension_numbers<[1], [0], [0], [1], [0, 0, 1, 1], [], []>} : vector<4x64xf32>, vector<64x256xf32>, vector<4x256xf32> -> vector<4x256xf32>
    %44 = arith.subf %43, %41 : vector<4x256xf32>
    %45 = vector.broadcast %0 : f32 to vector<4x256xf32>
    %46 = arith.mulf %44, %45 : vector<4x256xf32>
    %47 = arith.addf %41, %46 : vector<4x256xf32>
    %c0_26 = arith.constant 0 : index
    %c0_27 = arith.constant 0 : index
    %48 = vector.load %arg8[%c0_26, %c0_27] : memref<4x1xf32, #tpu.memory_space<vmem>>, vector<4x1xf32>
    %49 = vector.broadcast %48 : vector<4x1xf32> to vector<4x256xf32>
    %50 = arith.addf %47, %49 : vector<4x256xf32>
    %c0_28 = arith.constant 0 : index
    %c0_29 = arith.constant 0 : index
    %c0_30 = arith.constant 0 : index
    %51 = vector.load %arg9[%c0_28, %c0_29, %c0_30] : memref<1x4x256xf32, #tpu.memory_space<vmem>>, vector<1x4x256xf32>
    %52 = vector.shape_cast %51 : vector<1x4x256xf32> to vector<4x256xf32>
    %53 = vector.shape_cast %50 : vector<4x256xf32> to vector<1x4x256xf32>
    tpu.vector_store %arg9[%c0_28, %c0_29, %c0_30], %53 {strides = array<i32>} : memref<1x4x256xf32, #tpu.memory_space<vmem>>, vector<1x4x256xf32>,
    return
  }
  func.func @transform_0(%arg0: i32, %arg1: i32) -> i32 {
    %c0_i32 = arith.constant 0 : i32
    %c0_i32_0 = arith.constant 0 : i32
    return %c0_i32 : i32
  }
  func.func @transform_1(%arg0: i32, %arg1: i32) -> (i32, i32, i32) {
    %c0_i32 = arith.constant 0 : i32
    %c0_i32_0 = arith.constant 0 : i32
    return %arg0, %c0_i32, %arg1 : i32, i32, i32
  }
  func.func @transform_2(%arg0: i32, %arg1: i32) -> (i32, i32, i32) {
    %c0_i32 = arith.constant 0 : i32
    %c0_i32_0 = arith.constant 0 : i32
    %c0_i32_1 = arith.constant 0 : i32
    return %arg0, %c0_i32, %c0_i32_0 : i32, i32, i32
  }
  func.func @transform_3(%arg0: i32, %arg1: i32) -> (i32, i32, i32) {
    %c0_i32 = arith.constant 0 : i32
    %c0_i32_0 = arith.constant 0 : i32
    %c0_i32_1 = arith.constant 0 : i32
    return %arg0, %c0_i32, %c0_i32_0 : i32, i32, i32
  }
  func.func @transform_4(%arg0: i32, %arg1: i32) -> (i32, i32, i32) {
    %c0_i32 = arith.constant 0 : i32
    %c0_i32_0 = arith.constant 0 : i32
    %c0_i32_1 = arith.constant 0 : i32
    return %arg0, %c0_i32, %c0_i32_0 : i32, i32, i32
  }
  func.func @transform_5(%arg0: i32, %arg1: i32) -> (i32, i32) {
    %c0_i32 = arith.constant 0 : i32
    %c0_i32_0 = arith.constant 0 : i32
    %c0_i32_1 = arith.constant 0 : i32
    return %c0_i32, %c0_i32_0 : i32, i32
  }
  func.func @transform_6(%arg0: i32, %arg1: i32) -> (i32, i32) {
    %c0_i32 = arith.constant 0 : i32
    %c0_i32_0 = arith.constant 0 : i32
    %c0_i32_1 = arith.constant 0 : i32
    return %c0_i32, %c0_i32_0 : i32, i32
  }
  func.func @transform_7(%arg0: i32, %arg1: i32) -> (i32, i32, i32) {
    %c0_i32 = arith.constant 0 : i32
    %c0_i32_0 = arith.constant 0 : i32
    return %arg0, %c0_i32, %arg1 : i32, i32, i32
  }
}

</mosaic_0001>

<llo_original>
// kernel: tpu_custom_call.1
$region0: #{tpu_custom_call.1}
  #allocation0 [shape = 'u32[]', space=smem, size = 0x4, offset = 0x4, fixed_abs, tag = 'smem constant byte address 0x4 - core index']
  #allocation1 [shape = 'u32[144,128]{1,0:T(1,128)}', space=vmem, size = 0x12000, scoped, tag = 'internal scratch']
  #allocation2 [shape = 'f32[1]{0:T(128)S(6)}', space=smem, size = 0x200, scoped, tag = 'scoped memory for tpu_custom_call.1']
  %s0 = inlined_call_operand.<no memory space> [shape: f32[1], index: 0, kind: input, shape index: {}]
  %s1 = inlined_call_operand.vmem [shape: f32[2,4,256], index: 1, kind: input, shape index: {}]
  %s2 = inlined_call_operand.vmem [shape: f32[2,64,1], index: 2, kind: input, shape index: {}]
  %s3 = inlined_call_operand.vmem [shape: f32[2,64,1], index: 3, kind: input, shape index: {}]
  %s4 = inlined_call_operand.vmem [shape: f32[2,64,4], index: 4, kind: input, shape index: {}]
  %s5 = inlined_call_operand.vmem [shape: f32[4,64], index: 5, kind: input, shape index: {}]
  %s6 = inlined_call_operand.vmem [shape: f32[4,1], index: 6, kind: input, shape index: {}]
  %s7 = inlined_call_operand.hbm [shape: f32[2,4,256], index: 7, kind: output, shape index: {}]
  %s8 = sld [smem:[#allocation0]]
  $region61: #{tpu_custom_call.1} parent=0
    _
  %s10 = ssub.s32 1, %s8
  %s11 = scalar_select 0, %s10, %s8
  %12 = sst [smem:[#allocation2]] %s0
  $region1: #{tpu_custom_call.1} parent=0
    #allocation3 [shape = 'u8[8192]{0}', space=vmem, size = 0x2000, scoped, tag = 'output window, operand 0']
    #allocation4 [shape = 's32[2]{0}', space=sflag, size = 0x8, scoped, tag = 'scoped memory for tpu_custom_call.1']
    %13 = vsyncpa [#allocation4], 0
    %s14 = scalar_lea.sflag [#allocation4], 1
    %15 = vsyncpa %s14, 0
    loop: start=0, step=1, limit=4
    $region2: #{tpu_custom_call.1} parent=1 // loop_pre_header
      _
    $region3: #{tpu_custom_call.1} parent=1 // loop_header
      %s17 = sphi 0, %s21
      %p18 = scmp.ge.s32.totalorder %s17, 4
      %s24 = sphi 0, %s36
      %s25 = sphi 0, %s32
      %s26 = sphi 0, %s24
      %s27 = sphi 0, %s25
      %s28 = sphi 0, %s26
      %s29 = sphi 0, %s27
      %s37 = sphi 0, %s37
      %s39 = sphi 0, %s37
      %s40 = sphi 0, %s39
      %s54 = sphi 0, %s40
      %s62 = sphi 0, %s64
      %s65 = sphi 0, %s62
      %s66 = sphi 0, %s65
      %s82 = sphi 0, %s66
      %s88 = sphi 0, %s90
      %s91 = sphi 0, %s88
      %s92 = sphi 0, %s91
      %s108 = sphi 0, %s92
      %s114 = sphi 0, %s116
      %s117 = sphi 0, %s114
      %s118 = sphi 0, %s117
      %s134 = sphi 0, %s118
      %s140 = sphi 0, %s142
      %s143 = sphi 0, %s140
      %s144 = sphi 0, %s143
      %s160 = sphi 0, %s144
      %s164 = sphi 0, %s164
      %s166 = sphi 0, %s164
      %s167 = sphi 0, %s166
      %s181 = sphi 0, %s167
      %s185 = sphi 0, %s185
      %s187 = sphi 0, %s185
      %s188 = sphi 0, %s187
      %s202 = sphi 0, %s188
      %s210 = sphi 0, %s212
      %s213 = sphi 0, %s210
      %s214 = sphi 0, %s213
      %s230 = sphi 0, %s214
    $region4: #{tpu_custom_call.1} parent=1 // loop_header_branch
      %20 = sbr.rel (%p18) target = $region8
    $region5: #{tpu_custom_call.1} parent=1 // loop_body
      %s22 = ssub.s32 %s17, 1
      %s23 = ssub.s32 %s17, 2
      %s30 = sadd.s32 1, %s25
      %p31 = scmp.ge.s32.totalorder %s30, 1
      %s32 = scalar_select %p31, 0, %s30
      %s33 = sadd.s32 1, %s24
      %s34 = scalar_select %p31, %s33, %s24
      %p35 = scmp.ge.s32.totalorder %s34, 2
      %s36 = scalar_select %p35, 0, %s34
      %s38 = sadd.s32 %s37, 1
      %p41 = scmp.eq.s32.totalorder %s17, 1
      %p42 = scmp.ne.s32.totalorder %s37, %s39
      %p43 = scmp.eq.s32.totalorder %s17, 0
      %p44 = por %p42, %p43
      %p45 = scmp.ne.s32.totalorder %s37, %s39
      %p46 = scmp.eq.s32.totalorder %s22, 1
      %p47 = por %p45, %p46
      %p48 = scmp.ne.s32.totalorder %s39, %s40
      %p49 = scmp.eq.s32.totalorder %s22, 0
      %p50 = por %p48, %p49
      %p51 = scmp.ne.s32.totalorder %s39, %s40
      %p52 = scmp.eq.s32.totalorder %s23, 1
      %p53 = por %p51, %p52
      %p55 = scmp.ne.s32.totalorder %s40, %s54
      %p56 = scmp.eq.s32.totalorder %s23, 0
      %p57 = por %p55, %p56
      %s58 = ssub.s32 %s24, %s36
      %s59 = ssub.s32 %s25, %s32
      %s60 = sor.u32 %s58, %s59
      %p61 = scmp.eq.s32.totalorder %s60, 0
      %s63 = sadd.s32 %s62, 1
      %s64 = scalar_select %p61, %s62, %s63
      %p67 = pneg %p61
      %p68 = scmp.eq.s32.totalorder %s17, 1
      %p69 = por %p67, %p68
      %p70 = scmp.ne.s32.totalorder %s62, %s65
      %p71 = scmp.eq.s32.totalorder %s17, 0
      %p72 = por %p70, %p71
      %p73 = scmp.ne.s32.totalorder %s62, %s65
      %p74 = scmp.eq.s32.totalorder %s22, 1
      %p75 = por %p73, %p74
      %p76 = scmp.ne.s32.totalorder %s65, %s66
      %p77 = scmp.eq.s32.totalorder %s22, 0
      %p78 = por %p76, %p77
      %p79 = scmp.ne.s32.totalorder %s65, %s66
      %p80 = scmp.eq.s32.totalorder %s23, 1
      %p81 = por %p79, %p80
      %p83 = scmp.ne.s32.totalorder %s66, %s82
      %p84 = scmp.eq.s32.totalorder %s23, 0
      %p85 = por %p83, %p84
      %s86 = ssub.s32 %s24, %s36
      %p87 = scmp.eq.s32.totalorder %s86, 0
      %s89 = sadd.s32 %s88, 1
      %s90 = scalar_select %p87, %s88, %s89
      %p93 = pneg %p87
      %p94 = scmp.eq.s32.totalorder %s17, 1
      %p95 = por %p93, %p94
      %p96 = scmp.ne.s32.totalorder %s88, %s91
      %p97 = scmp.eq.s32.totalorder %s17, 0
      %p98 = por %p96, %p97
      %p99 = scmp.ne.s32.totalorder %s88, %s91
      %p100 = scmp.eq.s32.totalorder %s22, 1
      %p101 = por %p99, %p100
      %p102 = scmp.ne.s32.totalorder %s91, %s92
      %p103 = scmp.eq.s32.totalorder %s22, 0
      %p104 = por %p102, %p103
      %p105 = scmp.ne.s32.totalorder %s91, %s92
      %p106 = scmp.eq.s32.totalorder %s23, 1
      %p107 = por %p105, %p106
      %p109 = scmp.ne.s32.totalorder %s92, %s108
      %p110 = scmp.eq.s32.totalorder %s23, 0
      %p111 = por %p109, %p110
      %s112 = ssub.s32 %s24, %s36
      %p113 = scmp.eq.s32.totalorder %s112, 0
      %s115 = sadd.s32 %s114, 1
      %s116 = scalar_select %p113, %s114, %s115
      %p119 = pneg %p113
      %p120 = scmp.eq.s32.totalorder %s17, 1
      %p121 = por %p119, %p120
      %p122 = scmp.ne.s32.totalorder %s114, %s117
      %p123 = scmp.eq.s32.totalorder %s17, 0
      %p124 = por %p122, %p123
      %p125 = scmp.ne.s32.totalorder %s114, %s117
      %p126 = scmp.eq.s32.totalorder %s22, 1
      %p127 = por %p125, %p126
      %p128 = scmp.ne.s32.totalorder %s117, %s118
      %p129 = scmp.eq.s32.totalorder %s22, 0
      %p130 = por %p128, %p129
      %p131 = scmp.ne.s32.totalorder %s117, %s118
      %p132 = scmp.eq.s32.totalorder %s23, 1
      %p133 = por %p131, %p132
      %p135 = scmp.ne.s32.totalorder %s118, %s134
      %p136 = scmp.eq.s32.totalorder %s23, 0
      %p137 = por %p135, %p136
      %s138 = ssub.s32 %s24, %s36
      %p139 = scmp.eq.s32.totalorder %s138, 0
      %s141 = sadd.s32 %s140, 1
      %s142 = scalar_select %p139, %s140, %s141
      %p145 = pneg %p139
      %p146 = scmp.eq.s32.totalorder %s17, 1
      %p147 = por %p145, %p146
      %p148 = scmp.ne.s32.totalorder %s140, %s143
      %p149 = scmp.eq.s32.totalorder %s17, 0
      %p150 = por %p148, %p149
      %p151 = scmp.ne.s32.totalorder %s140, %s143
      %p152 = scmp.eq.s32.totalorder %s22, 1
      %p153 = por %p151, %p152
      %p154 = scmp.ne.s32.totalorder %s143, %s144
      %p155 = scmp.eq.s32.totalorder %s22, 0
      %p156 = por %p154, %p155
      %p157 = scmp.ne.s32.totalorder %s143, %s144
      %p158 = scmp.eq.s32.totalorder %s23, 1
      %p159 = por %p157, %p158
      %p161 = scmp.ne.s32.totalorder %s144, %s160
      %p162 = scmp.eq.s32.totalorder %s23, 0
      %p163 = por %p161, %p162
      %s165 = sadd.s32 %s164, 1
      %p168 = scmp.eq.s32.totalorder %s17, 1
      %p169 = scmp.ne.s32.totalorder %s164, %s166
      %p170 = scmp.eq.s32.totalorder %s17, 0
      %p171 = por %p169, %p170
      %p172 = scmp.ne.s32.totalorder %s164, %s166
      %p173 = scmp.eq.s32.totalorder %s22, 1
      %p174 = por %p172, %p173
      %p175 = scmp.ne.s32.totalorder %s166, %s167
      %p176 = scmp.eq.s32.totalorder %s22, 0
      %p177 = por %p175, %p176
      %p178 = scmp.ne.s32.totalorder %s166, %s167
      %p179 = scmp.eq.s32.totalorder %s23, 1
      %p180 = por %p178, %p179
      %p182 = scmp.ne.s32.totalorder %s167, %s181
      %p183 = scmp.eq.s32.totalorder %s23, 0
      %p184 = por %p182, %p183
      %s186 = sadd.s32 %s185, 1
      %p189 = scmp.eq.s32.totalorder %s17, 1
      %p190 = scmp.ne.s32.totalorder %s185, %s187
      %p191 = scmp.eq.s32.totalorder %s17, 0
      %p192 = por %p190, %p191
      %p193 = scmp.ne.s32.totalorder %s185, %s187
      %p194 = scmp.eq.s32.totalorder %s22, 1
      %p195 = por %p193, %p194
      %p196 = scmp.ne.s32.totalorder %s187, %s188
      %p197 = scmp.eq.s32.totalorder %s22, 0
      %p198 = por %p196, %p197
      %p199 = scmp.ne.s32.totalorder %s187, %s188
      %p200 = scmp.eq.s32.totalorder %s23, 1
      %p201 = por %p199, %p200
      %p203 = scmp.ne.s32.totalorder %s188, %s202
      %p204 = scmp.eq.s32.totalorder %s23, 0
      %p205 = por %p203, %p204
      %s206 = ssub.s32 %s24, %s36
      %s207 = ssub.s32 %s25, %s32
      %s208 = sor.u32 %s206, %s207
      %p209 = scmp.eq.s32.totalorder %s208, 0
      %s211 = sadd.s32 %s210, 1
      %s212 = scalar_select %p209, %s210, %s211
      %p215 = pneg %p209
      %p216 = scmp.eq.s32.totalorder %s17, 1
      %p217 = por %p215, %p216
      %p218 = scmp.ne.s32.totalorder %s210, %s213
      %p219 = scmp.eq.s32.totalorder %s17, 0
      %p220 = por %p218, %p219
      %p221 = scmp.ne.s32.totalorder %s210, %s213
      %p222 = scmp.eq.s32.totalorder %s22, 1
      %p223 = por %p221, %p222
      %p224 = scmp.ne.s32.totalorder %s213, %s214
      %p225 = scmp.eq.s32.totalorder %s22, 0
      %p226 = por %p224, %p225
      %p227 = scmp.ne.s32.totalorder %s213, %s214
      %p228 = scmp.eq.s32.totalorder %s23, 1
      %p229 = por %p227, %p228
      %p231 = scmp.ne.s32.totalorder %s214, %s230
      %p232 = scmp.eq.s32.totalorder %s23, 0
      %p233 = por %p231, %p232
      %p234 = scmp.le.s32.totalorder 1, %s17
      %p235 = scmp.lt.s32.totalorder %s17, 3
      %p236 = pnand %p234, %p235
      %p237 = pneg %p236
      // Predicated region
      $region9: #{tpu_custom_call.1} parent=5 // pred_check
        _
      $region10: #{tpu_custom_call.1} parent=5 // pred_check_branch
        %239 = sbr.rel (%p236) target = $region12
      $region11: #{tpu_custom_call.1} parent=5 // pred_region
        %s240 = ssub.s32 %s17, 1
        // Predicated region
        $region13: #{tpu_custom_call.1} parent=11 // pred_check
          %p241 = pneg %p50
        $region14: #{tpu_custom_call.1} parent=11 // pred_check_branch
          %243 = sbr.rel (%p241) target = $region16
        $region15: #{tpu_custom_call.1} parent=11 // pred_region
          _
        $region16: #{tpu_custom_call.1} parent=11 // pred_fallthru
          _
        // Predicated region
        $region17: #{tpu_custom_call.1} parent=11 // pred_check
          %p244 = pneg %p177
        $region18: #{tpu_custom_call.1} parent=11 // pred_check_branch
          %246 = sbr.rel (%p244) target = $region20
        $region19: #{tpu_custom_call.1} parent=11 // pred_region
          _
        $region20: #{tpu_custom_call.1} parent=11 // pred_fallthru
          _
        // Predicated region
        $region21: #{tpu_custom_call.1} parent=11 // pred_check
          %p247 = pneg %p198
        $region22: #{tpu_custom_call.1} parent=11 // pred_check_branch
          %249 = sbr.rel (%p247) target = $region24
        $region23: #{tpu_custom_call.1} parent=11 // pred_region
          _
        $region24: #{tpu_custom_call.1} parent=11 // pred_fallthru
          _
      $region12: #{tpu_custom_call.1} parent=5 // pred_fallthru
        _
      %p250 = scmp.lt.s32.totalorder %s17, 2
      // Predicated region
      $region25: #{tpu_custom_call.1} parent=5 // pred_check
        %p251 = pneg %p250
      $region26: #{tpu_custom_call.1} parent=5 // pred_check_branch
        %253 = sbr.rel (%p251) target = $region28
      $region27: #{tpu_custom_call.1} parent=5 // pred_region
        // Predicated region
        $region29: #{tpu_custom_call.1} parent=27 // pred_check
          %p254 = pneg %p72
        $region30: #{tpu_custom_call.1} parent=27 // pred_check_branch
          %256 = sbr.rel (%p254) target = $region32
        $region31: #{tpu_custom_call.1} parent=27 // pred_region
          %s257 = smul.u32 2, %s25
          %p258 = scmp.lt.s32.totalorder %s24, 1
          %s259 = scalar_select %p258, %s24, 1
          %p260 = scmp.lt.s32.totalorder %s257, 1
          %s261 = scalar_select %p260, %s257, 1
          %s262 = smul.addr %s259, 2
          %s263 = sadd.s32 %s261, %s262
          %s264 = smul.addr %s263, 4
          %s265 = scalar_lea.vmem %s1, %s264
          %s266 = smul.u32 2, %s25
        $region32: #{tpu_custom_call.1} parent=27 // pred_fallthru
          _
        // Predicated region
        $region33: #{tpu_custom_call.1} parent=27 // pred_check
          %p267 = pneg %p98
        $region34: #{tpu_custom_call.1} parent=27 // pred_check_branch
          %269 = sbr.rel (%p267) target = $region36
        $region35: #{tpu_custom_call.1} parent=27 // pred_region
          %p270 = scmp.lt.s32.totalorder %s24, 1
          %s271 = scalar_select %p270, %s24, 1
          %s272 = smul.addr %s271, 8
          %s273 = smul.addr %s272, 8
          %s274 = scalar_lea.vmem %s2, %s273
        $region36: #{tpu_custom_call.1} parent=27 // pred_fallthru
          _
        // Predicated region
        $region37: #{tpu_custom_call.1} parent=27 // pred_check
          %p275 = pneg %p124
        $region38: #{tpu_custom_call.1} parent=27 // pred_check_branch
          %277 = sbr.rel (%p275) target = $region40
        $region39: #{tpu_custom_call.1} parent=27 // pred_region
          %p278 = scmp.lt.s32.totalorder %s24, 1
          %s279 = scalar_select %p278, %s24, 1
          %s280 = smul.addr %s279, 8
          %s281 = smul.addr %s280, 8
          %s282 = scalar_lea.vmem %s3, %s281
        $region40: #{tpu_custom_call.1} parent=27 // pred_fallthru
          _
        // Predicated region
        $region41: #{tpu_custom_call.1} parent=27 // pred_check
          %p283 = pneg %p150
        $region42: #{tpu_custom_call.1} parent=27 // pred_check_branch
          %285 = sbr.rel (%p283) target = $region44
        $region43: #{tpu_custom_call.1} parent=27 // pred_region
          %p286 = scmp.lt.s32.totalorder %s24, 1
          %s287 = scalar_select %p286, %s24, 1
          %s288 = smul.addr %s287, 8
          %s289 = smul.addr %s288, 8
          %s290 = scalar_lea.vmem %s4, %s289
        $region44: #{tpu_custom_call.1} parent=27 // pred_fallthru
          _
      $region28: #{tpu_custom_call.1} parent=5 // pred_fallthru
        _
      %p291 = scmp.le.s32.totalorder 1, %s17
      %p292 = scmp.lt.s32.totalorder %s17, 3
      %p293 = pnand %p291, %p292
      %p294 = pneg %p293
      // Predicated region
      $region45: #{tpu_custom_call.1} parent=5 // pred_check
        _
      $region46: #{tpu_custom_call.1} parent=5 // pred_check_branch
        %296 = sbr.rel (%p293) target = $region48
      $region47: #{tpu_custom_call.1} parent=5 // pred_region
        %s297 = ssub.s32 %s17, 1
        %p298 = pneg %p50
        %p299 = pneg %p47
        %s300 = smul.u32 2, %s27
        %p301 = scmp.lt.s32.totalorder %s26, 1
        %s302 = scalar_select %p301, %s26, 1
        %p303 = scmp.lt.s32.totalorder %s300, 1
        %s304 = scalar_select %p303, %s300, 1
        %s305 = smul.addr %s302, 2
        %s306 = sadd.s32 %s304, %s305
        %s307 = smul.addr %s306, 4
        %s308 = scalar_lea.vmem %s1, %s307
        %p309 = pneg %p78
        %p310 = pneg %p75
        %p311 = scmp.lt.s32.totalorder %s26, 1
        %s312 = scalar_select %p311, %s26, 1
        %s313 = smul.addr %s312, 8
        %s314 = smul.addr %s313, 8
        %s315 = scalar_lea.vmem %s2, %s314
        %p316 = pneg %p104
        %p317 = pneg %p101
        %p318 = scmp.lt.s32.totalorder %s26, 1
        %s319 = scalar_select %p318, %s26, 1
        %s320 = smul.addr %s319, 8
        %s321 = smul.addr %s320, 8
        %s322 = scalar_lea.vmem %s3, %s321
        %p323 = pneg %p130
        %p324 = pneg %p127
        %p325 = scmp.lt.s32.totalorder %s26, 1
        %s326 = scalar_select %p325, %s26, 1
        %s327 = smul.addr %s326, 8
        %s328 = smul.addr %s327, 8
        %s329 = scalar_lea.vmem %s4, %s328
        %p330 = pneg %p156
        %p331 = pneg %p153
        %p332 = pneg %p177
        %p333 = pneg %p174
        %p334 = pneg %p198
        %p335 = pneg %p195
        %p336 = pneg %p226
        %p337 = pneg %p223
        %s338 = sand.u32 %s213, 1
        %s339 = scalar_lea.sflag [#allocation4], %s338
        %s340 = sand.u32 %s213, 1
        %s341 = smul.addr %s340, 8
        %s342 = scalar_lea.vmem [#allocation3], %s341
        %s343 = smul.u32 2, %s27
        %p344 = scmp.lt.s32.totalorder %s26, 1
        %s345 = scalar_select %p344, %s26, 1
        %p346 = scmp.lt.s32.totalorder %s343, 1
        %s347 = scalar_select %p346, %s343, 1
        %s348 = smul.addr %s345, 2
        %s349 = sadd.s32 %s347, %s348
        %s350 = smul.addr %s349, 4
        %s351 = scalar_lea.vmem %s1, %s350
        %s352 = smul.u32 2, %s27
        %p353 = scmp.lt.s32.totalorder %s26, 1
        %s354 = scalar_select %p353, %s26, 1
        %s355 = smul.addr %s354, 8
        %s356 = smul.addr %s355, 8
        %s357 = scalar_lea.vmem %s2, %s356
        %p358 = scmp.lt.s32.totalorder %s26, 1
        %s359 = scalar_select %p358, %s26, 1
        %s360 = smul.addr %s359, 8
        %s361 = smul.addr %s360, 8
        %s362 = scalar_lea.vmem %s3, %s361
        %p363 = scmp.lt.s32.totalorder %s26, 1
        %s364 = scalar_select %p363, %s26, 1
        %s365 = smul.addr %s364, 8
        %s366 = smul.addr %s365, 8
        %s367 = scalar_lea.vmem %s4, %s366
        %s368 = smul.u32 2, %s27
        %s369 = sld [smem:[#allocation2]]
        %v370 = vld [vmem:[%s351] sm:$0xff]
        %v371 = vld [vmem:[%s367] sm:$0xff]
        %v372 = vld [vmem:[%s367 + $0x8] sm:$0xff]
        %v373 = vld [vmem:[%s367 + $0x10] sm:$0xff]
        %v374 = vld [vmem:[%s367 + $0x18] sm:$0xff]
        %v375 = vld [vmem:[%s367 + $0x20] sm:$0xff]
        %v376 = vld [vmem:[%s367 + $0x28] sm:$0xff]
        %v377 = vld [vmem:[%s367 + $0x30] sm:$0xff]
        %v378 = vld [vmem:[%s367 + $0x38] sm:$0xff]
        %v380 = vcombine.high %v370, %v370
        %vm381 = vcmask 31744
        %v383 = vsel %vm381, %v371, 0
        %v386 = vsel %vm381, %v372, 0
        %v389 = vsel %vm381, %v373, 0
        %v392 = vsel %vm381, %v374, 0
        %v395 = vsel %vm381, %v375, 0
        %v398 = vsel %vm381, %v376, 0
        %v401 = vsel %vm381, %v377, 0
        %v404 = vsel %vm381, %v378, 0
        %vm406 = vcmask 1043456
        %v407 = vsel %vm406, %v370, 0
        %v409 = vsel %vm406, %v380, 0
        %411 = vmatprep.subr.mxu0 %v409
        %412 = vmatpush1.msra.mxu0 %v407
        %413 = vmatprep.subr.mxu0 0.0
        %414 = vmatpush1.msra.mxu0 0.0
        %415 = vmatprep.subr.mxu0 0.0
        %416 = vmatpush1.msra.mxu0 0.0
        %417 = vmatprep.subr.mxu0 0.0
        %418 = vmatpush1.msra.mxu0 0.0
        %419 = vmatprep.subr.mxu0 0.0
        %420 = vmatpush1.msra.mxu0 0.0
        %421 = vmatprep.subr.mxu0 0.0
        %422 = vmatpush1.msra.mxu0 0.0
        %423 = vmatprep.subr.mxu0 0.0
        %424 = vmatpush1.msra.mxu0 0.0
        %425 = vmatprep.subr.mxu0 0.0
        %426 = vmatpush1.msra.mxu0 0.0
        %427 = vmatprep.subr.mxu0 0.0
        %428 = vmatpush1.msra.mxu0 0.0
        %429 = vmatprep.subr.mxu0 0.0
        %430 = vmatpush1.msra.mxu0 0.0
        %431 = vmatprep.subr.mxu0 0.0
        %432 = vmatpush1.msra.mxu0 0.0
        %433 = vmatprep.subr.mxu0 0.0
        %434 = vmatpush1.msra.mxu0 0.0
        %435 = vmatprep.subr.mxu0 0.0
        %436 = vmatpush1.msra.mxu0 0.0
        %437 = vmatprep.subr.mxu0 0.0
        %438 = vmatpush1.msra.mxu0 0.0
        %439 = vmatprep.subr.mxu0 0.0
        %440 = vmatpush1.msra.mxu0 0.0
        %441 = vmatprep.subr.mxu0 0.0
        %442 = vmatpush1.msra.mxu0 0.0
        %443 = vmatprep.subr.mxu0 0.0
        %444 = vmatpush1.msra.mxu0 0.0
        %445 = vmatprep.subr.mxu0 0.0
        %446 = vmatpush1.msra.mxu0 0.0
        %447 = vmatprep.subr.mxu0 0.0
        %448 = vmatpush1.msra.mxu0 0.0
        %449 = vmatprep.subr.mxu0 0.0
        %450 = vmatpush1.msra.mxu0 0.0
        %451 = vmatprep.subr.mxu0 0.0
        %452 = vmatpush1.msra.mxu0 0.0
        %453 = vmatprep.subr.mxu0 0.0
        %454 = vmatpush1.msra.mxu0 0.0
        %455 = vmatprep.subr.mxu0 0.0
        %456 = vmatpush1.msra.mxu0 0.0
        %457 = vmatprep.subr.mxu0 0.0
        %458 = vmatpush1.msra.mxu0 0.0
        %459 = vmatprep.subr.mxu0 0.0
        %460 = vmatpush1.msra.mxu0 0.0
        %461 = vmatprep.subr.mxu0 0.0
        %462 = vmatpush1.msra.mxu0 0.0
        %463 = vmatprep.subr.mxu0 0.0
        %464 = vmatpush1.msra.mxu0 0.0
        %465 = vmatprep.subr.mxu0 0.0
        %466 = vmatpush1.msra.mxu0 0.0
        %467 = vmatprep.subr.mxu0 0.0
        %468 = vmatpush1.msra.mxu0 0.0
        %469 = vmatprep.subr.mxu0 0.0
        %470 = vmatpush1.msra.mxu0 0.0
        %471 = vmatprep.subr.mxu0 0.0
        %472 = vmatpush1.msra.mxu0 0.0
        %473 = vmatprep.subr.mxu0 0.0
        %474 = vmatpush1.msra.mxu0 0.0
        %475 = vmatprep.mubr.f32.mxu0 0.0
        %476 = vmatmul.mubr.f32.gmra.mrb[0].mxu0 %v383
        %v477 = vpop.f32.mrb[0].mxu0
        %v478 = vadd.f32 0.0, %v477
        %v479 = vpop.f32.mrb[0].mxu0
        %v480 = vadd.f32 0.0, %v479
        %481 = vmatprep.mubr.f32.mxu0 0.0
        %482 = vmatmul.mubr.f32.gmra.mrb[0].mxu0 %v386
        %v483 = vpop.f32.mrb[0].mxu0
        %v484 = vadd.f32 0.0, %v483
        %v485 = vpop.f32.mrb[0].mxu0
        %v486 = vadd.f32 0.0, %v485
        %487 = vmatprep.mubr.f32.mxu0 0.0
        %488 = vmatmul.mubr.f32.gmra.mrb[0].mxu0 %v389
        %v489 = vpop.f32.mrb[0].mxu0
        %v490 = vadd.f32 0.0, %v489
        %v491 = vpop.f32.mrb[0].mxu0
        %v492 = vadd.f32 0.0, %v491
        %493 = vmatprep.mubr.f32.mxu0 0.0
        %494 = vmatmul.mubr.f32.gmra.mrb[0].mxu0 %v392
        %v495 = vpop.f32.mrb[0].mxu0
        %v496 = vadd.f32 0.0, %v495
        %v497 = vpop.f32.mrb[0].mxu0
        %v498 = vadd.f32 0.0, %v497
        %499 = vmatprep.mubr.f32.mxu0 0.0
        %500 = vmatmul.mubr.f32.gmra.mrb[0].mxu0 %v395
        %v501 = vpop.f32.mrb[0].mxu0
        %v502 = vadd.f32 0.0, %v501
        %v503 = vpop.f32.mrb[0].mxu0
        %v504 = vadd.f32 0.0, %v503
        %505 = vmatprep.mubr.f32.mxu0 0.0
        %506 = vmatmul.mubr.f32.gmra.mrb[0].mxu0 %v398
        %v507 = vpop.f32.mrb[0].mxu0
        %v508 = vadd.f32 0.0, %v507
        %v509 = vpop.f32.mrb[0].mxu0
        %v510 = vadd.f32 0.0, %v509
        %511 = vmatprep.mubr.f32.mxu0 0.0
        %512 = vmatmul.mubr.f32.gmra.mrb[0].mxu0 %v401
        %v513 = vpop.f32.mrb[0].mxu0
        %v514 = vadd.f32 0.0, %v513
        %v515 = vpop.f32.mrb[0].mxu0
        %v516 = vadd.f32 0.0, %v515
        %517 = vmatprep.mubr.f32.mxu0 0.0
        %518 = vmatmul.mubr.f32.gmra.mrb[0].mxu0 %v404
        %v519 = vpop.f32.mrb[0].mxu0
        %v520 = vadd.f32 0.0, %v519
        %v521 = vpop.f32.mrb[0].mxu0
        %v522 = vadd.f32 0.0, %v521
        %523 = vdwg.mxu0
        %v524 = vld [vmem:[%s357] sm:$0xff]
        %v525 = vld [vmem:[%s357 + $0x8] sm:$0xff]
        %v526 = vld [vmem:[%s357 + $0x10] sm:$0xff]
        %v527 = vld [vmem:[%s357 + $0x18] sm:$0xff]
        %v528 = vld [vmem:[%s357 + $0x20] sm:$0xff]
        %v529 = vld [vmem:[%s357 + $0x28] sm:$0xff]
        %v530 = vld [vmem:[%s357 + $0x30] sm:$0xff]
        %v531 = vld [vmem:[%s357 + $0x38] sm:$0xff]
        %533 = vset.pattern.permute.xlu0 0
        %534 = vperm.xlu0 %533, %v524
        %v535 = vpop.permute.xlu0 %534
        %538 = vset.pattern.permute.xlu0 0
        %539 = vperm.xlu0 %538, %v525
        %v540 = vpop.permute.xlu0 %539
        %543 = vset.pattern.permute.xlu0 0
        %544 = vperm.xlu0 %543, %v526
        %v545 = vpop.permute.xlu0 %544
        %548 = vset.pattern.permute.xlu0 0
        %549 = vperm.xlu0 %548, %v527
        %v550 = vpop.permute.xlu0 %549
        %553 = vset.pattern.permute.xlu0 0
        %554 = vperm.xlu0 %553, %v528
        %v555 = vpop.permute.xlu0 %554
        %558 = vset.pattern.permute.xlu0 0
        %559 = vperm.xlu0 %558, %v529
        %v560 = vpop.permute.xlu0 %559
        %563 = vset.pattern.permute.xlu0 0
        %564 = vperm.xlu0 %563, %v530
        %v565 = vpop.permute.xlu0 %564
        %568 = vset.pattern.permute.xlu0 0
        %569 = vperm.xlu0 %568, %v531
        %v570 = vpop.permute.xlu0 %569
        %v572 = vadd.f32 %v478, %v535
        %v573 = vadd.f32 %v480, %v535
        %v574 = vadd.f32 %v484, %v540
        %v575 = vadd.f32 %v486, %v540
        %v576 = vadd.f32 %v490, %v545
        %v577 = vadd.f32 %v492, %v545
        %v578 = vadd.f32 %v496, %v550
        %v579 = vadd.f32 %v498, %v550
        %v580 = vadd.f32 %v502, %v555
        %v581 = vadd.f32 %v504, %v555
        %v582 = vadd.f32 %v508, %v560
        %v583 = vadd.f32 %v510, %v560
        %v584 = vadd.f32 %v514, %v565
        %v585 = vadd.f32 %v516, %v565
        %v586 = vadd.f32 %v520, %v570
        %v587 = vadd.f32 %v522, %v570
        %v588 = vmul.f32 %v572, %v572
        %v589 = vmul.f32 %v573, %v573
        %v590 = vmul.f32 %v574, %v574
        %v591 = vmul.f32 %v575, %v575
        %v592 = vmul.f32 %v576, %v576
        %v593 = vmul.f32 %v577, %v577
        %v594 = vmul.f32 %v578, %v578
        %v595 = vmul.f32 %v579, %v579
        %v596 = vmul.f32 %v580, %v580
        %v597 = vmul.f32 %v581, %v581
        %v598 = vmul.f32 %v582, %v582
        %v599 = vmul.f32 %v583, %v583
        %v600 = vmul.f32 %v584, %v584
        %v601 = vmul.f32 %v585, %v585
        %v602 = vmul.f32 %v586, %v586
        %v603 = vmul.f32 %v587, %v587
        %v604 = vmul.f32 %v572, %v588
        %v605 = vmul.f32 %v573, %v589
        %v606 = vmul.f32 %v574, %v590
        %v607 = vmul.f32 %v575, %v591
        %v608 = vmul.f32 %v576, %v592
        %v609 = vmul.f32 %v577, %v593
        %v610 = vmul.f32 %v578, %v594
        %v611 = vmul.f32 %v579, %v595
        %v612 = vmul.f32 %v580, %v596
        %v613 = vmul.f32 %v581, %v597
        %v614 = vmul.f32 %v582, %v598
        %v615 = vmul.f32 %v583, %v599
        %v616 = vmul.f32 %v584, %v600
        %v617 = vmul.f32 %v585, %v601
        %v618 = vmul.f32 %v586, %v602
        %v619 = vmul.f32 %v587, %v603
        %v620 = vmul.f32 %v604, 0.044715
        %v621 = vmul.f32 %v605, 0.044715
        %v622 = vmul.f32 %v606, 0.044715
        %v623 = vmul.f32 %v607, 0.044715
        %v624 = vmul.f32 %v608, 0.044715
        %v625 = vmul.f32 %v609, 0.044715
        %v626 = vmul.f32 %v610, 0.044715
        %v627 = vmul.f32 %v611, 0.044715
        %v628 = vmul.f32 %v612, 0.044715
        %v629 = vmul.f32 %v613, 0.044715
        %v630 = vmul.f32 %v614, 0.044715
        %v631 = vmul.f32 %v615, 0.044715
        %v632 = vmul.f32 %v616, 0.044715
        %v633 = vmul.f32 %v617, 0.044715
        %v634 = vmul.f32 %v618, 0.044715
        %v635 = vmul.f32 %v619, 0.044715
        %v636 = vadd.f32 %v572, %v620
        %v637 = vadd.f32 %v573, %v621
        %v638 = vadd.f32 %v574, %v622
        %v639 = vadd.f32 %v575, %v623
        %v640 = vadd.f32 %v576, %v624
        %v641 = vadd.f32 %v577, %v625
        %v642 = vadd.f32 %v578, %v626
        %v643 = vadd.f32 %v579, %v627
        %v644 = vadd.f32 %v580, %v628
        %v645 = vadd.f32 %v581, %v629
        %v646 = vadd.f32 %v582, %v630
        %v647 = vadd.f32 %v583, %v631
        %v648 = vadd.f32 %v584, %v632
        %v649 = vadd.f32 %v585, %v633
        %v650 = vadd.f32 %v586, %v634
        %v651 = vadd.f32 %v587, %v635
        %v652 = vmul.f32 %v636, 0.7978846
        %v653 = vmul.f32 %v637, 0.7978846
        %v654 = vmul.f32 %v638, 0.7978846
        %v655 = vmul.f32 %v639, 0.7978846
        %v656 = vmul.f32 %v640, 0.7978846
        %v657 = vmul.f32 %v641, 0.7978846
        %v658 = vmul.f32 %v642, 0.7978846
        %v659 = vmul.f32 %v643, 0.7978846
        %v660 = vmul.f32 %v644, 0.7978846
        %v661 = vmul.f32 %v645, 0.7978846
        %v662 = vmul.f32 %v646, 0.7978846
        %v663 = vmul.f32 %v647, 0.7978846
        %v664 = vmul.f32 %v648, 0.7978846
        %v665 = vmul.f32 %v649, 0.7978846
        %v666 = vmul.f32 %v650, 0.7978846
        %v667 = vmul.f32 %v651, 0.7978846
        %v668 = vtanh.pop %v652
        %v669 = vtanh.pop %v653
        %v670 = vtanh.pop %v654
        %v671 = vtanh.pop %v655
        %v672 = vtanh.pop %v656
        %v673 = vtanh.pop %v657
        %v674 = vtanh.pop %v658
        %v675 = vtanh.pop %v659
        %v676 = vtanh.pop %v660
        %v677 = vtanh.pop %v661
        %v678 = vtanh.pop %v662
        %v679 = vtanh.pop %v663
        %v680 = vtanh.pop %v664
        %v681 = vtanh.pop %v665
        %v682 = vtanh.pop %v666
        %v683 = vtanh.pop %v667
        %v684 = vadd.f32 %v668, 1.0
        %v685 = vadd.f32 %v669, 1.0
        %v686 = vadd.f32 %v670, 1.0
        %v687 = vadd.f32 %v671, 1.0
        %v688 = vadd.f32 %v672, 1.0
        %v689 = vadd.f32 %v673, 1.0
        %v690 = vadd.f32 %v674, 1.0
        %v691 = vadd.f32 %v675, 1.0
        %v692 = vadd.f32 %v676, 1.0
        %v693 = vadd.f32 %v677, 1.0
        %v694 = vadd.f32 %v678, 1.0
        %v695 = vadd.f32 %v679, 1.0
        %v696 = vadd.f32 %v680, 1.0
        %v697 = vadd.f32 %v681, 1.0
        %v698 = vadd.f32 %v682, 1.0
        %v699 = vadd.f32 %v683, 1.0
        %v700 = vmul.f32 %v684, 0.5
        %v701 = vmul.f32 %v685, 0.5
        %v702 = vmul.f32 %v686, 0.5
        %v703 = vmul.f32 %v687, 0.5
        %v704 = vmul.f32 %v688, 0.5
        %v705 = vmul.f32 %v689, 0.5
        %v706 = vmul.f32 %v690, 0.5
        %v707 = vmul.f32 %v691, 0.5
        %v708 = vmul.f32 %v692, 0.5
        %v709 = vmul.f32 %v693, 0.5
        %v710 = vmul.f32 %v694, 0.5
        %v711 = vmul.f32 %v695, 0.5
        %v712 = vmul.f32 %v696, 0.5
        %v713 = vmul.f32 %v697, 0.5
        %v714 = vmul.f32 %v698, 0.5
        %v715 = vmul.f32 %v699, 0.5
        %v716 = vmul.f32 %v572, %v700
        %v717 = vmul.f32 %v573, %v701
        %v718 = vmul.f32 %v574, %v702
        %v719 = vmul.f32 %v575, %v703
        %v720 = vmul.f32 %v576, %v704
        %v721 = vmul.f32 %v577, %v705
        %v722 = vmul.f32 %v578, %v706
        %v723 = vmul.f32 %v579, %v707
        %v724 = vmul.f32 %v580, %v708
        %v725 = vmul.f32 %v581, %v709
        %v726 = vmul.f32 %v582, %v710
        %v727 = vmul.f32 %v583, %v711
        %v728 = vmul.f32 %v584, %v712
        %v729 = vmul.f32 %v585, %v713
        %v730 = vmul.f32 %v586, %v714
        %v731 = vmul.f32 %v587, %v715
        %v732 = vld [vmem:[%s362] sm:$0xff]
        %v733 = vld [vmem:[%s362 + $0x8] sm:$0xff]
        %v734 = vld [vmem:[%s362 + $0x10] sm:$0xff]
        %v735 = vld [vmem:[%s362 + $0x18] sm:$0xff]
        %v736 = vld [vmem:[%s362 + $0x20] sm:$0xff]
        %v737 = vld [vmem:[%s362 + $0x28] sm:$0xff]
        %v738 = vld [vmem:[%s362 + $0x30] sm:$0xff]
        %v739 = vld [vmem:[%s362 + $0x38] sm:$0xff]
        %741 = vset.pattern.permute.xlu0 0
        %742 = vperm.xlu0 %741, %v732
        %v743 = vpop.permute.xlu0 %742
        %746 = vset.pattern.permute.xlu0 0
        %747 = vperm.xlu0 %746, %v733
        %v748 = vpop.permute.xlu0 %747
        %751 = vset.pattern.permute.xlu0 0
        %752 = vperm.xlu0 %751, %v734
        %v753 = vpop.permute.xlu0 %752
        %756 = vset.pattern.permute.xlu0 0
        %757 = vperm.xlu0 %756, %v735
        %v758 = vpop.permute.xlu0 %757
        %761 = vset.pattern.permute.xlu0 0
        %762 = vperm.xlu0 %761, %v736
        %v763 = vpop.permute.xlu0 %762
        %766 = vset.pattern.permute.xlu0 0
        %767 = vperm.xlu0 %766, %v737
        %v768 = vpop.permute.xlu0 %767
        %771 = vset.pattern.permute.xlu0 0
        %772 = vperm.xlu0 %771, %v738
        %v773 = vpop.permute.xlu0 %772
        %776 = vset.pattern.permute.xlu0 0
        %777 = vperm.xlu0 %776, %v739
        %v778 = vpop.permute.xlu0 %777
        %v780 = vadd.f32 %v478, %v743
        %v781 = vadd.f32 %v480, %v743
        %v782 = vadd.f32 %v484, %v748
        %v783 = vadd.f32 %v486, %v748
        %v784 = vadd.f32 %v490, %v753
        %v785 = vadd.f32 %v492, %v753
        %v786 = vadd.f32 %v496, %v758
        %v787 = vadd.f32 %v498, %v758
        %v788 = vadd.f32 %v502, %v763
        %v789 = vadd.f32 %v504, %v763
        %v790 = vadd.f32 %v508, %v768
        %v791 = vadd.f32 %v510, %v768
        %v792 = vadd.f32 %v514, %v773
        %v793 = vadd.f32 %v516, %v773
        %v794 = vadd.f32 %v520, %v778
        %v795 = vadd.f32 %v522, %v778
        %v796 = vmul.f32 %v780, %v780
        %v797 = vmul.f32 %v781, %v781
        %v798 = vmul.f32 %v782, %v782
        %v799 = vmul.f32 %v783, %v783
        %v800 = vmul.f32 %v784, %v784
        %v801 = vmul.f32 %v785, %v785
        %v802 = vmul.f32 %v786, %v786
        %v803 = vmul.f32 %v787, %v787
        %v804 = vmul.f32 %v788, %v788
        %v805 = vmul.f32 %v789, %v789
        %v806 = vmul.f32 %v790, %v790
        %v807 = vmul.f32 %v791, %v791
        %v808 = vmul.f32 %v792, %v792
        %v809 = vmul.f32 %v793, %v793
        %v810 = vmul.f32 %v794, %v794
        %v811 = vmul.f32 %v795, %v795
        %v812 = vmul.f32 %v780, %v796
        %v813 = vmul.f32 %v781, %v797
        %v814 = vmul.f32 %v782, %v798
        %v815 = vmul.f32 %v783, %v799
        %v816 = vmul.f32 %v784, %v800
        %v817 = vmul.f32 %v785, %v801
        %v818 = vmul.f32 %v786, %v802
        %v819 = vmul.f32 %v787, %v803
        %v820 = vmul.f32 %v788, %v804
        %v821 = vmul.f32 %v789, %v805
        %v822 = vmul.f32 %v790, %v806
        %v823 = vmul.f32 %v791, %v807
        %v824 = vmul.f32 %v792, %v808
        %v825 = vmul.f32 %v793, %v809
        %v826 = vmul.f32 %v794, %v810
        %v827 = vmul.f32 %v795, %v811
        %v828 = vmul.f32 %v812, 0.044715
        %v829 = vmul.f32 %v813, 0.044715
        %v830 = vmul.f32 %v814, 0.044715
        %v831 = vmul.f32 %v815, 0.044715
        %v832 = vmul.f32 %v816, 0.044715
        %v833 = vmul.f32 %v817, 0.044715
        %v834 = vmul.f32 %v818, 0.044715
        %v835 = vmul.f32 %v819, 0.044715
        %v836 = vmul.f32 %v820, 0.044715
        %v837 = vmul.f32 %v821, 0.044715
        %v838 = vmul.f32 %v822, 0.044715
        %v839 = vmul.f32 %v823, 0.044715
        %v840 = vmul.f32 %v824, 0.044715
        %v841 = vmul.f32 %v825, 0.044715
        %v842 = vmul.f32 %v826, 0.044715
        %v843 = vmul.f32 %v827, 0.044715
        %v844 = vadd.f32 %v780, %v828
        %v845 = vadd.f32 %v781, %v829
        %v846 = vadd.f32 %v782, %v830
        %v847 = vadd.f32 %v783, %v831
        %v848 = vadd.f32 %v784, %v832
        %v849 = vadd.f32 %v785, %v833
        %v850 = vadd.f32 %v786, %v834
        %v851 = vadd.f32 %v787, %v835
        %v852 = vadd.f32 %v788, %v836
        %v853 = vadd.f32 %v789, %v837
        %v854 = vadd.f32 %v790, %v838
        %v855 = vadd.f32 %v791, %v839
        %v856 = vadd.f32 %v792, %v840
        %v857 = vadd.f32 %v793, %v841
        %v858 = vadd.f32 %v794, %v842
        %v859 = vadd.f32 %v795, %v843
        %v860 = vmul.f32 %v844, 0.7978846
        %v861 = vmul.f32 %v845, 0.7978846
        %v862 = vmul.f32 %v846, 0.7978846
        %v863 = vmul.f32 %v847, 0.7978846
        %v864 = vmul.f32 %v848, 0.7978846
        %v865 = vmul.f32 %v849, 0.7978846
        %v866 = vmul.f32 %v850, 0.7978846
        %v867 = vmul.f32 %v851, 0.7978846
        %v868 = vmul.f32 %v852, 0.7978846
        %v869 = vmul.f32 %v853, 0.7978846
        %v870 = vmul.f32 %v854, 0.7978846
        %v871 = vmul.f32 %v855, 0.7978846
        %v872 = vmul.f32 %v856, 0.7978846
        %v873 = vmul.f32 %v857, 0.7978846
        %v874 = vmul.f32 %v858, 0.7978846
        %v875 = vmul.f32 %v859, 0.7978846
        %v876 = vtanh.pop %v860
        %v877 = vtanh.pop %v861
        %v878 = vtanh.pop %v862
        %v879 = vtanh.pop %v863
        %v880 = vtanh.pop %v864
        %v881 = vtanh.pop %v865
        %v882 = vtanh.pop %v866
        %v883 = vtanh.pop %v867
        %v884 = vtanh.pop %v868
        %v885 = vtanh.pop %v869
        %v886 = vtanh.pop %v870
        %v887 = vtanh.pop %v871
        %v888 = vtanh.pop %v872
        %v889 = vtanh.pop %v873
        %v890 = vtanh.pop %v874
        %v891 = vtanh.pop %v875
        %v892 = vadd.f32 %v876, 1.0
        %v893 = vadd.f32 %v877, 1.0
        %v894 = vadd.f32 %v878, 1.0
        %v895 = vadd.f32 %v879, 1.0
        %v896 = vadd.f32 %v880, 1.0
        %v897 = vadd.f32 %v881, 1.0
        %v898 = vadd.f32 %v882, 1.0
        %v899 = vadd.f32 %v883, 1.0
        %v900 = vadd.f32 %v884, 1.0
        %v901 = vadd.f32 %v885, 1.0
        %v902 = vadd.f32 %v886, 1.0
        %v903 = vadd.f32 %v887, 1.0
        %v904 = vadd.f32 %v888, 1.0
        %v905 = vadd.f32 %v889, 1.0
        %v906 = vadd.f32 %v890, 1.0
        %v907 = vadd.f32 %v891, 1.0
        %v908 = vmul.f32 %v892, 0.5
        %v909 = vmul.f32 %v893, 0.5
        %v910 = vmul.f32 %v894, 0.5
        %v911 = vmul.f32 %v895, 0.5
        %v912 = vmul.f32 %v896, 0.5
        %v913 = vmul.f32 %v897, 0.5
        %v914 = vmul.f32 %v898, 0.5
        %v915 = vmul.f32 %v899, 0.5
        %v916 = vmul.f32 %v900, 0.5
        %v917 = vmul.f32 %v901, 0.5
        %v918 = vmul.f32 %v902, 0.5
        %v919 = vmul.f32 %v903, 0.5
        %v920 = vmul.f32 %v904, 0.5
        %v921 = vmul.f32 %v905, 0.5
        %v922 = vmul.f32 %v906, 0.5
        %v923 = vmul.f32 %v907, 0.5
        %v924 = vmul.f32 %v780, %v908
        %v925 = vmul.f32 %v781, %v909
        %v926 = vmul.f32 %v782, %v910
        %v927 = vmul.f32 %v783, %v911
        %v928 = vmul.f32 %v784, %v912
        %v929 = vmul.f32 %v785, %v913
        %v930 = vmul.f32 %v786, %v914
        %v931 = vmul.f32 %v787, %v915
        %v932 = vmul.f32 %v788, %v916
        %v933 = vmul.f32 %v789, %v917
        %v934 = vmul.f32 %v790, %v918
        %v935 = vmul.f32 %v791, %v919
        %v936 = vmul.f32 %v792, %v920
        %v937 = vmul.f32 %v793, %v921
        %v938 = vmul.f32 %v794, %v922
        %v939 = vmul.f32 %v795, %v923
        %v940 = vld [vmem:[%s5] sm:$0xf]
        %vm941 = vcmask 523264
        %v943 = vsel %vm941, %v940, 0
        %945 = vmatprep.subr.mxu0 %v717
        %946 = vmatpush1.msra.mxu0 %v716
        %947 = vmatprep.subr.mxu0 %v719
        %948 = vmatpush1.msra.mxu0 %v718
        %949 = vmatprep.subr.mxu0 %v721
        %950 = vmatpush1.msra.mxu0 %v720
        %951 = vmatprep.subr.mxu0 %v723
        %952 = vmatpush1.msra.mxu0 %v722
        %953 = vmatprep.subr.mxu0 %v725
        %954 = vmatpush1.msra.mxu0 %v724
        %955 = vmatprep.subr.mxu0 %v727
        %956 = vmatpush1.msra.mxu0 %v726
        %957 = vmatprep.subr.mxu0 %v729
        %958 = vmatpush1.msra.mxu0 %v728
        %959 = vmatprep.subr.mxu0 %v731
        %960 = vmatpush1.msra.mxu0 %v730
        %961 = vmatprep.subr.mxu0 0.0
        %962 = vmatpush1.msra.mxu0 0.0
        %963 = vmatprep.subr.mxu0 0.0
        %964 = vmatpush1.msra.mxu0 0.0
        %965 = vmatprep.subr.mxu0 0.0
        %966 = vmatpush1.msra.mxu0 0.0
        %967 = vmatprep.subr.mxu0 0.0
        %968 = vmatpush1.msra.mxu0 0.0
        %969 = vmatprep.subr.mxu0 0.0
        %970 = vmatpush1.msra.mxu0 0.0
        %971 = vmatprep.subr.mxu0 0.0
        %972 = vmatpush1.msra.mxu0 0.0
        %973 = vmatprep.subr.mxu0 0.0
        %974 = vmatpush1.msra.mxu0 0.0
        %975 = vmatprep.subr.mxu0 0.0
        %976 = vmatpush1.msra.mxu0 0.0
        %977 = vmatprep.subr.mxu0 0.0
        %978 = vmatpush1.msra.mxu0 0.0
        %979 = vmatprep.subr.mxu0 0.0
        %980 = vmatpush1.msra.mxu0 0.0
        %981 = vmatprep.subr.mxu0 0.0
        %982 = vmatpush1.msra.mxu0 0.0
        %983 = vmatprep.subr.mxu0 0.0
        %984 = vmatpush1.msra.mxu0 0.0
        %985 = vmatprep.subr.mxu0 0.0
        %986 = vmatpush1.msra.mxu0 0.0
        %987 = vmatprep.subr.mxu0 0.0
        %988 = vmatpush1.msra.mxu0 0.0
        %989 = vmatprep.subr.mxu0 0.0
        %990 = vmatpush1.msra.mxu0 0.0
        %991 = vmatprep.subr.mxu0 0.0
        %992 = vmatpush1.msra.mxu0 0.0
        %993 = vmatprep.subr.mxu0 0.0
        %994 = vmatpush1.msra.mxu0 0.0
        %995 = vmatprep.subr.mxu0 0.0
        %996 = vmatpush1.msra.mxu0 0.0
        %997 = vmatprep.subr.mxu0 0.0
        %998 = vmatpush1.msra.mxu0 0.0
        %999 = vmatprep.subr.mxu0 0.0
        %1000 = vmatpush1.msra.mxu0 0.0
        %1001 = vmatprep.subr.mxu0 0.0
        %1002 = vmatpush1.msra.mxu0 0.0
        %1003 = vmatprep.subr.mxu0 0.0
        %1004 = vmatpush1.msra.mxu0 0.0
        %1005 = vmatprep.subr.mxu0 0.0
        %1006 = vmatpush1.msra.mxu0 0.0
        %1007 = vmatprep.subr.mxu0 0.0
        %1008 = vmatpush1.msra.mxu0 0.0
        %1009 = vmatprep.mubr.f32.mxu0 0.0
        %1010 = vmatmul.mubr.f32.gmra.mrb[0].mxu0 %v943
        %v1011 = vpop.f32.mrb[0].mxu0
        %v1012 = vadd.f32 0.0, %v1011
        %v1013 = vpop.f32.mrb[0].mxu0
        %v1014 = vadd.f32 0.0, %v1013
        %1015 = vdwg.mxu0
        %1016 = vmatprep.subr.mxu0 %v925
        %1017 = vmatpush1.msra.mxu0 %v924
        %1018 = vmatprep.subr.mxu0 %v927
        %1019 = vmatpush1.msra.mxu0 %v926
        %1020 = vmatprep.subr.mxu0 %v929
        %1021 = vmatpush1.msra.mxu0 %v928
        %1022 = vmatprep.subr.mxu0 %v931
        %1023 = vmatpush1.msra.mxu0 %v930
        %1024 = vmatprep.subr.mxu0 %v933
        %1025 = vmatpush1.msra.mxu0 %v932
        %1026 = vmatprep.subr.mxu0 %v935
        %1027 = vmatpush1.msra.mxu0 %v934
        %1028 = vmatprep.subr.mxu0 %v937
        %1029 = vmatpush1.msra.mxu0 %v936
        %1030 = vmatprep.subr.mxu0 %v939
        %1031 = vmatpush1.msra.mxu0 %v938
        %1032 = vmatprep.subr.mxu0 0.0
        %1033 = vmatpush1.msra.mxu0 0.0
        %1034 = vmatprep.subr.mxu0 0.0
        %1035 = vmatpush1.msra.mxu0 0.0
        %1036 = vmatprep.subr.mxu0 0.0
        %1037 = vmatpush1.msra.mxu0 0.0
        %1038 = vmatprep.subr.mxu0 0.0
        %1039 = vmatpush1.msra.mxu0 0.0
        %1040 = vmatprep.subr.mxu0 0.0
        %1041 = vmatpush1.msra.mxu0 0.0
        %1042 = vmatprep.subr.mxu0 0.0
        %1043 = vmatpush1.msra.mxu0 0.0
        %1044 = vmatprep.subr.mxu0 0.0
        %1045 = vmatpush1.msra.mxu0 0.0
        %1046 = vmatprep.subr.mxu0 0.0
        %1047 = vmatpush1.msra.mxu0 0.0
        %1048 = vmatprep.subr.mxu0 0.0
        %1049 = vmatpush1.msra.mxu0 0.0
        %1050 = vmatprep.subr.mxu0 0.0
        %1051 = vmatpush1.msra.mxu0 0.0
        %1052 = vmatprep.subr.mxu0 0.0
        %1053 = vmatpush1.msra.mxu0 0.0
        %1054 = vmatprep.subr.mxu0 0.0
        %1055 = vmatpush1.msra.mxu0 0.0
        %1056 = vmatprep.subr.mxu0 0.0
        %1057 = vmatpush1.msra.mxu0 0.0
        %1058 = vmatprep.subr.mxu0 0.0
        %1059 = vmatpush1.msra.mxu0 0.0
        %1060 = vmatprep.subr.mxu0 0.0
        %1061 = vmatpush1.msra.mxu0 0.0
        %1062 = vmatprep.subr.mxu0 0.0
        %1063 = vmatpush1.msra.mxu0 0.0
        %1064 = vmatprep.subr.mxu0 0.0
        %1065 = vmatpush1.msra.mxu0 0.0
        %1066 = vmatprep.subr.mxu0 0.0
        %1067 = vmatpush1.msra.mxu0 0.0
        %1068 = vmatprep.subr.mxu0 0.0
        %1069 = vmatpush1.msra.mxu0 0.0
        %1070 = vmatprep.subr.mxu0 0.0
        %1071 = vmatpush1.msra.mxu0 0.0
        %1072 = vmatprep.subr.mxu0 0.0
        %1073 = vmatpush1.msra.mxu0 0.0
        %1074 = vmatprep.subr.mxu0 0.0
        %1075 = vmatpush1.msra.mxu0 0.0
        %1076 = vmatprep.subr.mxu0 0.0
        %1077 = vmatpush1.msra.mxu0 0.0
        %1078 = vmatprep.subr.mxu0 0.0
        %1079 = vmatpush1.msra.mxu0 0.0
        %1080 = vmatprep.mubr.f32.mxu0 0.0
        %1081 = vmatmul.mubr.f32.gmra.mrb[0].mxu0 %v943
        %v1082 = vpop.f32.mrb[0].mxu0
        %v1083 = vadd.f32 0.0, %v1082
        %v1084 = vpop.f32.mrb[0].mxu0
        %v1085 = vadd.f32 0.0, %v1084
        %1086 = vdwg.mxu0
        %v1087 = vsub.f32 %v1083, %v1012
        %v1088 = vsub.f32 %v1085, %v1014
        %v1089 = vstv %s369
        %v1090 = vmul.f32 %v1087, %v1089
        %v1091 = vmul.f32 %v1088, %v1089
        %v1092 = vadd.f32 %v1012, %v1090
        %v1093 = vadd.f32 %v1014, %v1091
        %v1094 = vld [vmem:[%s6] sm:$0xf]
        %1096 = vset.pattern.permute.xlu0 0
        %1097 = vperm.xlu0 %1096, %v1094
        %v1098 = vpop.permute.xlu0 %1097
        %v1100 = vadd.f32 %v1092, %v1098
        %v1101 = vadd.f32 %v1093, %v1098
        %v1104 = vcombine.low %v1100, %v1101
        %1106 = vst [vmem:[%s342] sm:$0xff] %v1104
        %s1107 = sand.u32 %s213, 1
        %s1108 = scalar_lea.sflag [#allocation4], %s1107
        %s1109 = sand.u32 %s213, 1
        %s1110 = smul.addr %s1109, 8
        %s1111 = scalar_lea.vmem [#allocation3], %s1110
        // Predicated region
        $region49: #{tpu_custom_call.1} parent=47 // pred_check
          %p1112 = pneg %p223
        $region50: #{tpu_custom_call.1} parent=47 // pred_check_branch
          %1114 = sbr.rel (%p1112) target = $region52
        $region51: #{tpu_custom_call.1} parent=47 // pred_region
          %s1115 = smul.u32 2, %s27
          %s1117 = ssub.s32 128, 128
          %1118 = vsyncadd %s1108, %s1117
          %s1119 = smul.addr %s26, 2
          %s1120 = sadd.s32 %s1115, %s1119
          %s1121 = smul.addr %s1120, 64
          %s1122 = scalar_lea.hbm %s7, %s1121
          %s1124 = sshll.u32 %s1111, 4
          %s1125 = int_to_ptr.vmem [resolvable:$true] %s1124
          %1127 = dma.vmem_to_hbm [thread:$0]  %s1125, 128, %s1122, %s1108
        $region52: #{tpu_custom_call.1} parent=47 // pred_fallthru
          _
      $region48: #{tpu_custom_call.1} parent=5 // pred_fallthru
        _
      %p1128 = scmp.le.s32.totalorder 2, %s17
      // Predicated region
      $region53: #{tpu_custom_call.1} parent=5 // pred_check
        %p1129 = pneg %p1128
      $region54: #{tpu_custom_call.1} parent=5 // pred_check_branch
        %1131 = sbr.rel (%p1129) target = $region56
      $region55: #{tpu_custom_call.1} parent=5 // pred_region
        %s1132 = ssub.s32 %s17, 2
        // Predicated region
        $region57: #{tpu_custom_call.1} parent=55 // pred_check
          %p1133 = pneg %p229
        $region58: #{tpu_custom_call.1} parent=55 // pred_check_branch
          %1135 = sbr.rel (%p1133) target = $region60
        $region59: #{tpu_custom_call.1} parent=55 // pred_region
          %s1136 = sand.u32 %s214, 1
          %s1137 = scalar_lea.sflag [#allocation4], %s1136
          %s1138 = sand.u32 %s214, 1
          %s1139 = smul.addr %s1138, 8
          %s1140 = scalar_lea.vmem [#allocation3], %s1139
          %1141 = dma.done %s1137, 128
        $region60: #{tpu_custom_call.1} parent=55 // pred_fallthru
          _
      $region56: #{tpu_custom_call.1} parent=5 // pred_fallthru
        _
    $region6: #{tpu_custom_call.1} parent=1 // loop_footer
      %s21 = sadd.s32 1, %s17
    $region7: #{tpu_custom_call.1} parent=1 // loop_footer_branch
      %16 = sbr.rel target = $region3
    $region8: #{tpu_custom_call.1} parent=1 // loop_exit
      _
    %1142 = vsyncpa [#allocation4], 1
    %s1143 = scalar_lea.sflag [#allocation4], 1
    %1144 = vsyncpa %s1143, 1

</llo_original>
